<compile_context>
chip_gen: v6e
topology: v6e:2x2x1
jax: 0.10.0
libtpu: 0.0.40
codegen_flags: <defaults>
</compile_context>

<pallas_src>
import functools

import jax
import jax.numpy as jnp
from jax.experimental import pallas as pl
from jax.experimental.pallas import tpu as pltpu

NEG = 1000000.0
_LANE = 128
_SUBLANE = 8


# ---------------------------------------------------------------------------
# small math helpers (traced inside kernels)
# ---------------------------------------------------------------------------
def _log_sigmoid(x):
    # numerically stable log(sigmoid(x)); jnp.where discards the overflowing branch.
    return jnp.where(x >= 0.0, -jnp.log1p(jnp.exp(-x)), x - jnp.log1p(jnp.exp(x)))


def _log_softmax(x, axis):
    m = jnp.max(x, axis=axis, keepdims=True)
    s = x - m
    return s - jnp.log(jnp.sum(jnp.exp(s), axis=axis, keepdims=True))


def _full_spec(shape):
    nd = len(shape)
    return pl.BlockSpec(shape, lambda i, _nd=nd: (0,) * _nd)


# ---------------------------------------------------------------------------
# Kernel 1: pooled-output heads (tiny; one lane-dense padded matmul)
# ---------------------------------------------------------------------------
def _pooled_single_kernel(p_ref, w_ref, b_ref,
                          cfs_ref, cfw_ref, agg_ref, op_ref, wn_ref,
                          *, agg_num, op_num, wn_num):
    p = p_ref[...].astype(jnp.float32)                               # (B, H)
    logits = jnp.dot(p, w_ref[...], preferred_element_type=jnp.float32) + b_ref[...]
    o_op = 2 + agg_num
    o_wn = o_op + op_num
    cfs_ref[...] = _log_sigmoid(logits[:, 0:1])
    cfw_ref[...] = _log_sigmoid(logits[:, 1:2])
    agg_ref[...] = _log_softmax(logits[:, 2:2 + agg_num], axis=1)
    op_ref[...] = _log_softmax(logits[:, o_op:o_op + op_num], axis=1)
    wn_ref[...] = _log_softmax(logits[:, o_wn:o_wn + wn_num], axis=1)


def _pooled_dual_kernel(pstack_ref, w_ref, b_ref,
                        cfs_ref, cfw_ref, agg_ref, op_ref, wn_ref, out_ref,
                        *, batch, bpad, agg_num, op_num, wn_num):
    # pstack holds pooled_output in rows [0:B] and pooled_output1 in rows
    # [bpad:bpad+B] (bpad is B rounded up to a sublane multiple for aligned slices).
    ps = pstack_ref[...].astype(jnp.float32)                          # (2*bpad, H)
    logits_all = jnp.dot(ps, w_ref[...],
                         preferred_element_type=jnp.float32) + b_ref[...]
    l0 = logits_all[0:batch]
    l1 = logits_all[bpad:bpad + batch]
    o_op = 2 + agg_num
    o_wn = o_op + op_num
    cfs_ref[...] = _log_sigmoid(l0[:, 0:1])
    cfw_ref[...] = 0.5 * (_log_sigmoid(l0[:, 1:2]) + _log_sigmoid(l1[:, 1:2]))
    agg_ref[...] = _log_softmax(l0[:, 2:2 + agg_num], axis=1)
    op_ref[...] = 0.5 * (_log_softmax(l0[:, o_op:o_op + op_num], axis=1)
                         + _log_softmax(l1[:, o_op:o_op + op_num], axis=1))
    wn_ref[...] = 0.5 * (_log_softmax(l0[:, o_wn:o_wn + wn_num], axis=1)
                         + _log_softmax(l1[:, o_wn:o_wn + wn_num], axis=1))
    out_ref[...] = (0.5 * (ps[0:batch] + ps[bpad:bpad + batch])).astype(out_ref.dtype)


# ---------------------------------------------------------------------------
# Kernel 2: sequence-output heads (HBM-streaming bound; batch-tiled + pipelined)
# ---------------------------------------------------------------------------
def _seq_single_kernel(bert_ref, mask_ref, w_ref, b_ref, vs_ref, ve_ref):
    x = bert_ref[...]                              # (bt, S, H), input dtype
    m = mask_ref[...]                              # (bt, S) f32
    se = jnp.einsum('bsh,hd->bsd', x, w_ref[...],
                    preferred_element_type=jnp.float32) + b_ref[...][None, :, :]
    start = se[:, :, 0] * m - NEG * (1.0 - m)
    end = se[:, :, 1] * m - NEG * (1.0 - m)
    vs_ref[...] = _log_softmax(start, axis=1)
    ve_ref[...] = _log_softmax(end, axis=1)


def _seq_dual_kernel(bert_ref, bert1_ref, mask_ref, w_ref, b_ref,
                     vs_ref, ve_ref, bout_ref):
    x = bert_ref[...]                              # (bt, S, H)
    x1 = bert1_ref[...]
    m = mask_ref[...]                              # (bt, S) f32
    w = w_ref[...]
    b = b_ref[...][None, :, :]
    se = jnp.einsum('bsh,hd->bsd', x, w, preferred_element_type=jnp.float32) + b
    se1 = jnp.einsum('bsh,hd->bsd', x1, w, preferred_element_type=jnp.float32) + b
    start = se[:, :, 0] * m - NEG * (1.0 - m)
    end = se[:, :, 1] * m - NEG * (1.0 - m)
    start1 = se1[:, :, 0] * m - NEG * (1.0 - m)
    end1 = se1[:, :, 1] * m - NEG * (1.0 - m)
    vs_ref[...] = 0.5 * (_log_softmax(start, axis=1) + _log_softmax(start1, axis=1))
    ve_ref[...] = 0.5 * (_log_softmax(end, axis=1) + _log_softmax(end1, axis=1))
    x32 = x.astype(jnp.float32)
    x132 = x1.astype(jnp.float32)
    bout_ref[...] = (0.5 * (x32 + x132)).astype(bout_ref.dtype)


# ---------------------------------------------------------------------------
# Tiling helpers
# ---------------------------------------------------------------------------
def _choose_block_batch(batch, per_row_bytes, max_block_bytes=20 * 1024 * 1024):
    """Largest sublane-aligned divisor of `batch` whose block fits the budget."""
    if batch <= _SUBLANE:
        return batch
    cands = [d for d in range(_SUBLANE, batch + 1, _SUBLANE) if batch % d == 0]
    if not cands:
        return batch
    fits = [d for d in cands if d * per_row_bytes <= max_block_bytes]
    return max(fits) if fits else min(cands)


def _vmem_limit(block_bytes):
    # 2x for double buffering, plus slack; keep within the smallest-VMEM chip (v7x).
    est = 2 * block_bytes + (4 << 20)
    return int(min(max(est, 16 << 20), 48 << 20))


# ---------------------------------------------------------------------------
# Wrapper
# ---------------------------------------------------------------------------
def hydranet_heads(bert_output, bert_output1, pooled_output, pooled_output1,
                   input_mask, params, *, agg_num, op_num, where_column_num,
                   block_batch=None):
    B, S, H = bert_output.shape
    wn_num = where_column_num + 1
    io_dtype = bert_output.dtype
    in_itemsize = jnp.dtype(io_dtype).itemsize

    # drop_rate == 0 / eval: the two base-model passes are the same array, so the
    # duplicate-branch math collapses (0.5*(f(x)+f(x)) == f(x)).
    single_stream = (bert_output1 is bert_output) and (pooled_output1 is pooled_output)

    mask_f = input_mask.astype(jnp.float32)
    w_se = params['w_se'].astype(io_dtype)                  # MXU-native with stream dtype
    b_se = params['b_se'].astype(jnp.float32).reshape(1, 2)

    # ---- pooled heads: concatenated weights padded to a lane-dense 128 columns ----
    w_all = jnp.concatenate([params['w_cfs'], params['w_cfw'], params['w_agg'],
                             params['w_op'], params['w_wn']], axis=1).astype(jnp.float32)
    b_all = jnp.concatenate([params['b_cfs'], params['b_cfw'], params['b_agg'],
                             params['b_op'], params['b_wn']],
                            axis=0).astype(jnp.float32)[None, :]
    Ctot = w_all.shape[1]
    CP = max(_LANE, ((Ctot + _LANE - 1) // _LANE) * _LANE)
    w_pad = jnp.pad(w_all, ((0, 0), (0, CP - Ctot)))
    b_pad = jnp.pad(b_all, ((0, 0), (0, CP - Ctot)))

    head_shapes = (
        jax.ShapeDtypeStruct((B, 1), jnp.float32),           # column_funcs
        jax.ShapeDtypeStruct((B, 1), jnp.float32),           # column_funcw
        jax.ShapeDtypeStruct((B, agg_num), jnp.float32),     # agg
        jax.ShapeDtypeStruct((B, op_num), jnp.float32),      # op
        jax.ShapeDtypeStruct((B, wn_num), jnp.float32),      # where_num
    )
    pooled_cp = pltpu.CompilerParams(dimension_semantics=("arbitrary",),
                                     vmem_limit_bytes=16 << 20)

    if single_stream:
        pooled_call = pl.pallas_call(
            functools.partial(_pooled_single_kernel,
                              agg_num=agg_num, op_num=op_num, wn_num=wn_num),
            grid=(1,),
            in_specs=[_full_spec((B, H)), _full_spec((H, CP)), _full_spec((1, CP))],
            out_specs=tuple(_full_spec(s.shape) for s in head_shapes),
            out_shape=head_shapes,
            compiler_params=pooled_cp,
        )
        cfs, cfw, agg_o, op_o, wn_o = pooled_call(pooled_output, w_pad, b_pad)
        pooled_avg = pooled_output                           # 0.5 * (p + p) == p
    else:
        bpad = ((B + _SUBLANE - 1) // _SUBLANE) * _SUBLANE
        zrows = jnp.zeros((bpad - B, H), pooled_output.dtype)
        pstack = jnp.concatenate([pooled_output, zrows, pooled_output1, zrows], axis=0)
        out_shapes = head_shapes + (jax.ShapeDtypeStruct((B, H), pooled_output.dtype),)
        pooled_call = pl.pallas_call(
            functools.partial(_pooled_dual_kernel, batch=B, bpad=bpad,
                              agg_num=agg_num, op_num=op_num, wn_num=wn_num),
            grid=(1,),
            in_specs=[_full_spec((2 * bpad, H)), _full_spec((H, CP)),
                      _full_spec((1, CP))],
            out_specs=tuple(_full_spec(s.shape) for s in out_shapes),
            out_shape=out_shapes,
            compiler_params=pooled_cp,
        )
        cfs, cfw, agg_o, op_o, wn_o, pooled_avg = pooled_call(pstack, w_pad, b_pad)

    # ---- sequence heads: batch-tiled, pipelined streaming kernel ----
    n_big = 1 if single_stream else 3                        # (B,S,H) operands per step
    if block_batch is not None:
        bt = int(block_batch)
        if B % bt != 0 or (bt != B and bt % _SUBLANE != 0):
            bt = B
    else:
        bt = _choose_block_batch(B, n_big * S * H * in_itemsize)
    nb = B // bt

    block_bytes = (n_big * bt * S * H * in_itemsize          # bert (+ bert1 + bout)
                   + 3 * bt * S * 4                          # mask + vs + ve
                   + (H * 2 + 2) * 4)                        # w_se + b_se
    seq_cp = pltpu.CompilerParams(dimension_semantics=("parallel",),
                                  vmem_limit_bytes=_vmem_limit(block_bytes))

    if single_stream:
        seq_out_shapes = (jax.ShapeDtypeStruct((B, S), jnp.float32),
                          jax.ShapeDtypeStruct((B, S), jnp.float32))
        seq_call = pl.pallas_call(
            _seq_single_kernel,
            grid=(nb,),
            in_specs=[pl.BlockSpec((bt, S, H), lambda i: (i, 0, 0)),
                      pl.BlockSpec((bt, S), lambda i: (i, 0)),
                      pl.BlockSpec((H, 2), lambda i: (0, 0)),
                      pl.BlockSpec((1, 2), lambda i: (0, 0))],
            out_specs=(pl.BlockSpec((bt, S), lambda i: (i, 0)),
                       pl.BlockSpec((bt, S), lambda i: (i, 0))),
            out_shape=seq_out_shapes,
            compiler_params=seq_cp,
        )
        vs, ve = seq_call(bert_output, mask_f, w_se, b_se)
        bout = bert_output                                   # 0.5 * (x + x) == x
    else:
        seq_out_shapes = (jax.ShapeDtypeStruct((B, S), jnp.float32),
                          jax.ShapeDtypeStruct((B, S), jnp.float32),
                          jax.ShapeDtypeStruct((B, S, H), io_dtype))
        seq_call = pl.pallas_call(
            _seq_dual_kernel,
            grid=(nb,),
            in_specs=[pl.BlockSpec((bt, S, H), lambda i: (i, 0, 0)),
                      pl.BlockSpec((bt, S, H), lambda i: (i, 0, 0)),
                      pl.BlockSpec((bt, S), lambda i: (i, 0)),
                      pl.BlockSpec((H, 2), lambda i: (0, 0)),
                      pl.BlockSpec((1, 2), lambda i: (0, 0))],
            out_specs=(pl.BlockSpec((bt, S), lambda i: (i, 0)),
                       pl.BlockSpec((bt, S), lambda i: (i, 0)),
                       pl.BlockSpec((bt, S, H), lambda i: (i, 0, 0))),
            out_shape=seq_out_shapes,
            compiler_params=seq_cp,
        )
        vs, ve, bout = seq_call(bert_output, bert_output1, mask_f, w_se, b_se)

    return {
        'column_funcs': cfs,
        'column_funcw': cfw,
        'agg': agg_o,
        'op': op_o,
        'where_num': wn_o,
        'value_start': vs,
        'value_end': ve,
        'loss': None,            # select is None -> no training loss (inference path)
        'output': pooled_avg,
        'boutput': bout,
    }


# ---------------------------------------------------------------------------
# Pure-jnp reference (for correctness checking only)
# ---------------------------------------------------------------------------
def hydranet_heads_reference(bert_output, bert_output1, pooled_output,
                             pooled_output1, input_mask, params):
    def lin(x, w, b):
        return jnp.dot(x.astype(jnp.float32), w.astype(jnp.float32)) + b.astype(jnp.float32)

    cfs = lin(pooled_output, params['w_cfs'], params['b_cfs'])
    cfw = lin(pooled_output, params['w_cfw'], params['b_cfw'])
    cfw1 = lin(pooled_output1, params['w_cfw'], params['b_cfw'])
    agg = lin(pooled_output, params['w_agg'], params['b_agg'])
    op = lin(pooled_output, params['w_op'], params['b_op'])
    op1 = lin(pooled_output1, params['w_op'], params['b_op'])
    wn = lin(pooled_output, params['w_wn'], params['b_wn'])
    wn1 = lin(pooled_output1, params['w_wn'], params['b_wn'])

    se = jnp.einsum('bsh,hd->bsd', bert_output.astype(jnp.float32),
                    params['w_se']) + params['b_se']
    se1 = jnp.einsum('bsh,hd->bsd', bert_output1.astype(jnp.float32),
                     params['w_se']) + params['b_se']
    m = input_mask.astype(jnp.float32)
    start = se[:, :, 0] * m - NEG * (1.0 - m)
    end = se[:, :, 1] * m - NEG * (1.0 - m)
    start1 = se1[:, :, 0] * m - NEG * (1.0 - m)
    end1 = se1[:, :, 1] * m - NEG * (1.0 - m)
    lsm = jax.nn.log_softmax
    lsg = jax.nn.log_sigmoid
    return {
        'column_funcs': lsg(cfs),
        'column_funcw': 0.5 * (lsg(cfw) + lsg(cfw1)),
        'agg': lsm(agg, axis=1),
        'op': 0.5 * (lsm(op, axis=1) + lsm(op1, axis=1)),
        'where_num': 0.5 * (lsm(wn, axis=1) + lsm(wn1, axis=1)),
        'value_start': 0.5 * (lsm(start, axis=1) + lsm(start1, axis=1)),
        'value_end': 0.5 * (lsm(end, axis=1) + lsm(end1, axis=1)),
        'loss': None,
        'output': 0.5 * (pooled_output + pooled_output1),
        'boutput': 0.5 * (bert_output + bert_output1),
    }


if __name__ == "__main__":
    # Small deterministic shapes consistent with the forward pass.
    B, S, H = 16, 16, 128          # batch, max_total_length, bert_hid_size
    AGG_NUM, OP_NUM, WHERE_COL_NUM = 6, 4, 4

    key = jax.random.PRNGKey(0)
    ks = jax.random.split(key, 20)

    # Synthetic deterministic "base model" activations.
    bert_output = jax.random.normal(ks[0], (B, S, H), jnp.float32)
    pooled_output = jnp.tanh(jax.random.normal(ks[1], (B, H), jnp.float32))
    # Second base-model pass (only differs when dropout > 0; used to exercise the
    # general dual-stream path).
    bert_output1 = bert_output + 0.01 * jax.random.normal(ks[2], (B, S, H), jnp.float32)
    pooled_output1 = jnp.tanh(jax.random.normal(ks[3], (B, H), jnp.float32))

    # Attention mask: first 12 tokens valid per sequence.
    input_mask = (jnp.arange(S)[None, :] < 12).astype(jnp.float32)
    input_mask = jnp.broadcast_to(input_mask, (B, S))

    # Deterministic head parameters (shapes from HydraNet.__init__), stored (in, out).
    params = {
        'w_cfs': 0.02 * jax.random.normal(ks[4], (H, 1), jnp.float32),
        'b_cfs': 0.02 * jax.random.normal(ks[5], (1,), jnp.float32),
        'w_cfw': 0.02 * jax.random.normal(ks[6], (H, 1), jnp.float32),
        'b_cfw': 0.02 * jax.random.normal(ks[7], (1,), jnp.float32),
        'w_agg': 0.02 * jax.random.normal(ks[8], (H, AGG_NUM), jnp.float32),
        'b_agg': 0.02 * jax.random.normal(ks[9], (AGG_NUM,), jnp.float32),
        'w_op': 0.02 * jax.random.normal(ks[10], (H, OP_NUM), jnp.float32),
        'b_op': 0.02 * jax.random.normal(ks[11], (OP_NUM,), jnp.float32),
        'w_wn': 0.02 * jax.random.normal(ks[12], (H, WHERE_COL_NUM + 1), jnp.float32),
        'b_wn': 0.02 * jax.random.normal(ks[13], (WHERE_COL_NUM + 1,), jnp.float32),
        'w_se': 0.02 * jax.random.normal(ks[14], (H, 2), jnp.float32),
        'b_se': 0.02 * jax.random.normal(ks[15], (2,), jnp.float32),
    }

    head_kwargs = dict(agg_num=AGG_NUM, op_num=OP_NUM, where_column_num=WHERE_COL_NUM)

    # 1) inference / drop_rate == 0 path: both base-model passes are the same array,
    #    so the wrapper specializes to the single-stream kernels.
    res_single = hydranet_heads(bert_output, bert_output, pooled_output, pooled_output,
                                input_mask, params, block_batch=8, **head_kwargs)
    ref_single = hydranet_heads_reference(bert_output, bert_output, pooled_output,
                                          pooled_output, input_mask, params)

    # 2) general dual-stream path (distinct activations from the two passes).
    res_dual = hydranet_heads(bert_output, bert_output1, pooled_output, pooled_output1,
                              input_mask, params, block_batch=8, **head_kwargs)
    ref_dual = hydranet_heads_reference(bert_output, bert_output1, pooled_output,
                                        pooled_output1, input_mask, params)

    keys_to_check = ['column_funcs', 'column_funcw', 'agg', 'op', 'where_num',
                     'value_start', 'value_end', 'output', 'boutput']
    for res, ref in ((res_single, ref_single), (res_dual, ref_dual)):
        assert res['loss'] is None
        for k in keys_to_check:
            a = jax.block_until_ready(res[k]).astype(jnp.float32)
            b = ref[k].astype(jnp.float32)
            assert a.shape == b.shape, (k, a.shape, b.shape)
            assert bool(jnp.all(jnp.isfinite(a))), k
            assert bool(jnp.allclose(a, b, rtol=1e-2, atol=1e-2)), k

    assert res_dual['agg'].shape == (B, AGG_NUM)
    assert res_dual['value_start'].shape == (B, S)
    assert res_dual['boutput'].shape == (B, S, H)

    print("KERNEL_OK")
</pallas_src>

<mosaic_0001>
module attributes {stable_mosaic.version = 11 : i64} {
  func.func @_pooled_single_kernel(%arg0: i32, %arg1: memref<16x128xf32, #tpu.memory_space<vmem>>, %arg2: memref<128x128xf32, #tpu.memory_space<vmem>>, %arg3: memref<1x128xf32, #tpu.memory_space<vmem>>, %arg4: memref<16x1xf32, #tpu.memory_space<vmem>>, %arg5: memref<16x1xf32, #tpu.memory_space<vmem>>, %arg6: memref<16x6xf32, #tpu.memory_space<vmem>>, %arg7: memref<16x4xf32, #tpu.memory_space<vmem>>, %arg8: memref<16x5xf32, #tpu.memory_space<vmem>>) attributes {dimension_semantics = [#tpu.dimension_semantics<arbitrary>], iteration_bounds = array<i64: 1>, scalar_prefetch = 0 : i64, scratch_operands = 0 : i64, tpu.core_type = #tpu.core_type<tc>, window_params = [{pipeline_mode = #tpu.pipeline_mode<synchronous>, transform_indices = @transform_0, window_bounds = array<i64: 16, 128>}, {pipeline_mode = #tpu.pipeline_mode<synchronous>, transform_indices = @transform_1, window_bounds = array<i64: 128, 128>}, {pipeline_mode = #tpu.pipeline_mode<synchronous>, transform_indices = @transform_2, window_bounds = array<i64: 1, 128>}, {pipeline_mode = #tpu.pipeline_mode<synchronous>, transform_indices = @transform_3, window_bounds = array<i64: 16, 1>}, {pipeline_mode = #tpu.pipeline_mode<synchronous>, transform_indices = @transform_4, window_bounds = array<i64: 16, 1>}, {pipeline_mode = #tpu.pipeline_mode<synchronous>, transform_indices = @transform_5, window_bounds = array<i64: 16, 6>}, {pipeline_mode = #tpu.pipeline_mode<synchronous>, transform_indices = @transform_6, window_bounds = array<i64: 16, 4>}, {pipeline_mode = #tpu.pipeline_mode<synchronous>, transform_indices = @transform_7, window_bounds = array<i64: 16, 5>}]} {
    %c0 = arith.constant 0 : index
    %c0_0 = arith.constant 0 : index
    %0 = vector.load %arg1[%c0, %c0_0] : memref<16x128xf32, #tpu.memory_space<vmem>>, vector<16x128xf32>
    %c0_1 = arith.constant 0 : index
    %c0_2 = arith.constant 0 : index
    %1 = vector.load %arg2[%c0_1, %c0_2] : memref<128x128xf32, #tpu.memory_space<vmem>>, vector<128x128xf32>
    %cst = arith.constant dense<0.000000e+00> : vector<16x128xf32>
    %2 = tpu.matmul %0, %1, %cst {dimension_numbers = #tpu.dot_dimension_numbers<[1], [0], [0], [1], [0, 0, 1, 1], [], []>} : vector<16x128xf32>, vector<128x128xf32>, vector<16x128xf32> -> vector<16x128xf32>
    %c0_3 = arith.constant 0 : index
    %c0_4 = arith.constant 0 : index
    %3 = vector.load %arg3[%c0_3, %c0_4] : memref<1x128xf32, #tpu.memory_space<vmem>>, vector<1x128xf32>
    %4 = vector.broadcast %3 : vector<1x128xf32> to vector<16x128xf32>
    %5 = arith.addf %2, %4 : vector<16x128xf32>
    %6 = vector.extract_strided_slice %5 {offsets = [0, 0], sizes = [16, 1], strides = [1, 1]} : vector<16x128xf32> to vector<16x1xf32>
    %cst_5 = arith.constant 0.000000e+00 : f32
    %7 = vector.broadcast %cst_5 : f32 to vector<16x1xf32>
    %8 = arith.cmpf oge, %6, %7 : vector<16x1xf32>
    %cst_6 = arith.constant 0.000000e+00 : f32
    %9 = vector.broadcast %cst_6 : f32 to vector<16x1xf32>
    %10 = arith.subf %9, %6 : vector<16x1xf32>
    %11 = math.exp %10 : vector<16x1xf32>
    %12 = math.log1p %11 : vector<16x1xf32>
    %cst_7 = arith.constant 0.000000e+00 : f32
    %13 = vector.broadcast %cst_7 : f32 to vector<16x1xf32>
    %14 = arith.subf %13, %12 : vector<16x1xf32>
    %15 = math.exp %6 : vector<16x1xf32>
    %16 = math.log1p %15 : vector<16x1xf32>
    %17 = arith.subf %6, %16 : vector<16x1xf32>
    %18 = arith.select %8, %14, %17 : vector<16x1xi1>, vector<16x1xf32>
    %c0_8 = arith.constant 0 : index
    %c0_9 = arith.constant 0 : index
    %19 = vector.load %arg4[%c0_8, %c0_9] : memref<16x1xf32, #tpu.memory_space<vmem>>, vector<16x1xf32>
    tpu.vector_store %arg4[%c0_8, %c0_9], %18 {strides = array<i32>} : memref<16x1xf32, #tpu.memory_space<vmem>>, vector<16x1xf32>,
    %20 = vector.extract_strided_slice %5 {offsets = [0, 1], sizes = [16, 1], strides = [1, 1]} : vector<16x128xf32> to vector<16x1xf32>
    %cst_10 = arith.constant 0.000000e+00 : f32
    %21 = vector.broadcast %cst_10 : f32 to vector<16x1xf32>
    %22 = arith.cmpf oge, %20, %21 : vector<16x1xf32>
    %cst_11 = arith.constant 0.000000e+00 : f32
    %23 = vector.broadcast %cst_11 : f32 to vector<16x1xf32>
    %24 = arith.subf %23, %20 : vector<16x1xf32>
    %25 = math.exp %24 : vector<16x1xf32>
    %26 = math.log1p %25 : vector<16x1xf32>
    %cst_12 = arith.constant 0.000000e+00 : f32
    %27 = vector.broadcast %cst_12 : f32 to vector<16x1xf32>
    %28 = arith.subf %27, %26 : vector<16x1xf32>
    %29 = math.exp %20 : vector<16x1xf32>
    %30 = math.log1p %29 : vector<16x1xf32>
    %31 = arith.subf %20, %30 : vector<16x1xf32>
    %32 = arith.select %22, %28, %31 : vector<16x1xi1>, vector<16x1xf32>
    %c0_13 = arith.constant 0 : index
    %c0_14 = arith.constant 0 : index
    %33 = vector.load %arg5[%c0_13, %c0_14] : memref<16x1xf32, #tpu.memory_space<vmem>>, vector<16x1xf32>
    tpu.vector_store %arg5[%c0_13, %c0_14], %32 {strides = array<i32>} : memref<16x1xf32, #tpu.memory_space<vmem>>, vector<16x1xf32>,
    %34 = vector.extract_strided_slice %5 {offsets = [0, 2], sizes = [16, 6], strides = [1, 1]} : vector<16x128xf32> to vector<16x6xf32>
    %cst_15 = arith.constant dense<0xFF800000> : vector<16xf32>
    %35 = vector.multi_reduction <maximumf>, %34, %cst_15 [1] : vector<16x6xf32> to vector<16xf32>
    %36 = vector.shape_cast %35 : vector<16xf32> to vector<16x1xf32>
    %37 = vector.broadcast %36 : vector<16x1xf32> to vector<16x6xf32>
    %38 = arith.subf %34, %37 : vector<16x6xf32>
    %39 = math.exp %38 : vector<16x6xf32>
    %cst_16 = arith.constant dense<0.000000e+00> : vector<16xf32>
    %40 = vector.multi_reduction <add>, %39, %cst_16 [1] : vector<16x6xf32> to vector<16xf32>
    %41 = vector.shape_cast %40 : vector<16xf32> to vector<16x1xf32>
    %42 = math.log %41 : vector<16x1xf32>
    %43 = vector.broadcast %42 : vector<16x1xf32> to vector<16x6xf32>
    %44 = arith.subf %38, %43 : vector<16x6xf32>
    %c0_17 = arith.constant 0 : index
    %c0_18 = arith.constant 0 : index
    %45 = vector.load %arg6[%c0_17, %c0_18] : memref<16x6xf32, #tpu.memory_space<vmem>>, vector<16x6xf32>
    tpu.vector_store %arg6[%c0_17, %c0_18], %44 {strides = array<i32>} : memref<16x6xf32, #tpu.memory_space<vmem>>, vector<16x6xf32>,
    %46 = vector.extract_strided_slice %5 {offsets = [0, 8], sizes = [16, 4], strides = [1, 1]} : vector<16x128xf32> to vector<16x4xf32>
    %cst_19 = arith.constant dense<0xFF800000> : vector<16xf32>
    %47 = vector.multi_reduction <maximumf>, %46, %cst_19 [1] : vector<16x4xf32> to vector<16xf32>
    %48 = vector.shape_cast %47 : vector<16xf32> to vector<16x1xf32>
    %49 = vector.broadcast %48 : vector<16x1xf32> to vector<16x4xf32>
    %50 = arith.subf %46, %49 : vector<16x4xf32>
    %51 = math.exp %50 : vector<16x4xf32>
    %cst_20 = arith.constant dense<0.000000e+00> : vector<16xf32>
    %52 = vector.multi_reduction <add>, %51, %cst_20 [1] : vector<16x4xf32> to vector<16xf32>
    %53 = vector.shape_cast %52 : vector<16xf32> to vector<16x1xf32>
    %54 = math.log %53 : vector<16x1xf32>
    %55 = vector.broadcast %54 : vector<16x1xf32> to vector<16x4xf32>
    %56 = arith.subf %50, %55 : vector<16x4xf32>
    %c0_21 = arith.constant 0 : index
    %c0_22 = arith.constant 0 : index
    %57 = vector.load %arg7[%c0_21, %c0_22] : memref<16x4xf32, #tpu.memory_space<vmem>>, vector<16x4xf32>
    tpu.vector_store %arg7[%c0_21, %c0_22], %56 {strides = array<i32>} : memref<16x4xf32, #tpu.memory_space<vmem>>, vector<16x4xf32>,
    %58 = vector.extract_strided_slice %5 {offsets = [0, 12], sizes = [16, 5], strides = [1, 1]} : vector<16x128xf32> to vector<16x5xf32>
    %cst_23 = arith.constant dense<0xFF800000> : vector<16xf32>
    %59 = vector.multi_reduction <maximumf>, %58, %cst_23 [1] : vector<16x5xf32> to vector<16xf32>
    %60 = vector.shape_cast %59 : vector<16xf32> to vector<16x1xf32>
    %61 = vector.broadcast %60 : vector<16x1xf32> to vector<16x5xf32>
    %62 = arith.subf %58, %61 : vector<16x5xf32>
    %63 = math.exp %62 : vector<16x5xf32>
    %cst_24 = arith.constant dense<0.000000e+00> : vector<16xf32>
    %64 = vector.multi_reduction <add>, %63, %cst_24 [1] : vector<16x5xf32> to vector<16xf32>
    %65 = vector.shape_cast %64 : vector<16xf32> to vector<16x1xf32>
    %66 = math.log %65 : vector<16x1xf32>
    %67 = vector.broadcast %66 : vector<16x1xf32> to vector<16x5xf32>
    %68 = arith.subf %62, %67 : vector<16x5xf32>
    %c0_25 = arith.constant 0 : index
    %c0_26 = arith.constant 0 : index
    %69 = vector.load %arg8[%c0_25, %c0_26] : memref<16x5xf32, #tpu.memory_space<vmem>>, vector<16x5xf32>
    tpu.vector_store %arg8[%c0_25, %c0_26], %68 {strides = array<i32>} : memref<16x5xf32, #tpu.memory_space<vmem>>, vector<16x5xf32>,
    return
  }
  func.func @transform_0(%arg0: i32) -> (i32, i32) {
    %c0_i32 = arith.constant 0 : i32
    %c0_i32_0 = arith.constant 0 : i32
    %c0_i32_1 = arith.constant 0 : i32
    return %c0_i32, %c0_i32_0 : i32, i32
  }
  func.func @transform_1(%arg0: i32) -> (i32, i32) {
    %c0_i32 = arith.constant 0 : i32
    %c0_i32_0 = arith.constant 0 : i32
    %c0_i32_1 = arith.constant 0 : i32
    return %c0_i32, %c0_i32_0 : i32, i32
  }
  func.func @transform_2(%arg0: i32) -> (i32, i32) {
    %c0_i32 = arith.constant 0 : i32
    %c0_i32_0 = arith.constant 0 : i32
    %c0_i32_1 = arith.constant 0 : i32
    return %c0_i32, %c0_i32_0 : i32, i32
  }
  func.func @transform_3(%arg0: i32) -> (i32, i32) {
    %c0_i32 = arith.constant 0 : i32
    %c0_i32_0 = arith.constant 0 : i32
    %c0_i32_1 = arith.constant 0 : i32
    return %c0_i32, %c0_i32_0 : i32, i32
  }
  func.func @transform_4(%arg0: i32) -> (i32, i32) {
    %c0_i32 = arith.constant 0 : i32
    %c0_i32_0 = arith.constant 0 : i32
    %c0_i32_1 = arith.constant 0 : i32
    return %c0_i32, %c0_i32_0 : i32, i32
  }
  func.func @transform_5(%arg0: i32) -> (i32, i32) {
    %c0_i32 = arith.constant 0 : i32
    %c0_i32_0 = arith.constant 0 : i32
    %c0_i32_1 = arith.constant 0 : i32
    return %c0_i32, %c0_i32_0 : i32, i32
  }
  func.func @transform_6(%arg0: i32) -> (i32, i32) {
    %c0_i32 = arith.constant 0 : i32
    %c0_i32_0 = arith.constant 0 : i32
    %c0_i32_1 = arith.constant 0 : i32
    return %c0_i32, %c0_i32_0 : i32, i32
  }
  func.func @transform_7(%arg0: i32) -> (i32, i32) {
    %c0_i32 = arith.constant 0 : i32
    %c0_i32_0 = arith.constant 0 : i32
    %c0_i32_1 = arith.constant 0 : i32
    return %c0_i32, %c0_i32_0 : i32, i32
  }
}

</mosaic_0001>

<llo_original>
// kernel: tpu_custom_call.1
$region0: #{tpu_custom_call.1}
  #allocation0 [shape = 'u32[]', space=smem, size = 0x4, offset = 0x4, fixed_abs, tag = 'smem constant byte address 0x4 - core index']
  #allocation1 [shape = 'u32[144,128]{1,0:T(1,128)}', space=vmem, size = 0x12000, scoped, tag = 'internal scratch']
  %s0 = inlined_call_operand.hbm [shape: f32[16,128], index: 0, kind: input, shape index: {}]
  %s1 = inlined_call_operand.hbm [shape: f32[128,128], index: 1, kind: input, shape index: {}]
  %s2 = inlined_call_operand.vmem [shape: f32[1,128], index: 2, kind: input, shape index: {}]
  %s3 = inlined_call_operand.vmem [shape: f32[16,1], index: 3, kind: output, shape index: {0}]
  %s4 = inlined_call_operand.vmem [shape: f32[16,1], index: 4, kind: output, shape index: {1}]
  %s5 = inlined_call_operand.vmem [shape: f32[16,6], index: 5, kind: output, shape index: {2}]
  %s6 = inlined_call_operand.vmem [shape: f32[16,4], index: 6, kind: output, shape index: {3}]
  %s7 = inlined_call_operand.vmem [shape: f32[16,5], index: 7, kind: output, shape index: {4}]
  %8 = xla_tuple %s3, %s4, %s5, %s6, %s7
  %s9 = sld [smem:[#allocation0]]
  $region62: #{tpu_custom_call.1} parent=0
    _
  %s11 = ssub.s32 1, %s9
  %s12 = scalar_select 0, %s11, %s9
  $region1: #{tpu_custom_call.1} parent=0
    #allocation2 [shape = 'u8[8192]{0}', space=vmem, size = 0x2000, scoped, tag = 'input window, operand 0, single buffered']
    #allocation3 [shape = 's32[1]{0}', space=sflag, size = 0x4, scoped, tag = 'scoped memory for tpu_custom_call.1']
    #allocation4 [shape = 'u8[65536]{0}', space=vmem, size = 0x10000, scoped, tag = 'input window, operand 1, single buffered']
    #allocation5 [shape = 's32[1]{0}', space=sflag, size = 0x4, scoped, tag = 'scoped memory for tpu_custom_call.1']
    %13 = vsyncpa [#allocation3], 0
    %14 = vsyncpa [#allocation5], 0
    // Predicated region
    $region2: #{tpu_custom_call.1} parent=1 // pred_check
      _
    $region3: #{tpu_custom_call.1} parent=1 // pred_check_branch
      %16 = sbr.rel (0) target = $region5
    $region4: #{tpu_custom_call.1} parent=1 // pred_region
      %s18 = ssub.s32 256, 256
      %19 = vsyncadd [#allocation3], %s18
      %s20 = sshll.u32 [#allocation2], 4
      %s21 = int_to_ptr.vmem [resolvable:$true] %s20
      %26 = dma.hbm_to_vmem [thread:$0]  %s0, 256, %s21, [#allocation3], 128, 128, 8
    $region5: #{tpu_custom_call.1} parent=1 // pred_fallthru
      _
    // Predicated region
    $region6: #{tpu_custom_call.1} parent=1 // pred_check
      _
    $region7: #{tpu_custom_call.1} parent=1 // pred_check_branch
      %28 = sbr.rel (0) target = $region9
    $region8: #{tpu_custom_call.1} parent=1 // pred_region
      %s30 = ssub.s32 2048, 2048
      %31 = vsyncadd [#allocation5], %s30
      %s32 = sshll.u32 [#allocation4], 4
      %s33 = int_to_ptr.vmem [resolvable:$true] %s32
      %38 = dma.hbm_to_vmem [thread:$0]  %s1, 2048, %s33, [#allocation5], 128, 128, 8
    $region9: #{tpu_custom_call.1} parent=1 // pred_fallthru
      _
    // Predicated region
    $region10: #{tpu_custom_call.1} parent=1 // pred_check
      _
    $region11: #{tpu_custom_call.1} parent=1 // pred_check_branch
      %40 = sbr.rel (0) target = $region13
    $region12: #{tpu_custom_call.1} parent=1 // pred_region
      _
    $region13: #{tpu_custom_call.1} parent=1 // pred_fallthru
      _
    // Predicated region
    $region14: #{tpu_custom_call.1} parent=1 // pred_check
      _
    $region15: #{tpu_custom_call.1} parent=1 // pred_check_branch
      %42 = sbr.rel (0) target = $region17
    $region16: #{tpu_custom_call.1} parent=1 // pred_region
      %43 = dma.done [#allocation3], 256
    $region17: #{tpu_custom_call.1} parent=1 // pred_fallthru
      _
    // Predicated region
    $region18: #{tpu_custom_call.1} parent=1 // pred_check
      _
    $region19: #{tpu_custom_call.1} parent=1 // pred_check_branch
      %45 = sbr.rel (0) target = $region21
    $region20: #{tpu_custom_call.1} parent=1 // pred_region
      %46 = dma.done [#allocation5], 2048
    $region21: #{tpu_custom_call.1} parent=1 // pred_fallthru
      _
    %v47 = vld [vmem:[#allocation2] sm:$0xff]
    %v48 = vld [vmem:[#allocation2 + $0x8] sm:$0xff]
    %v49 = vld [vmem:[#allocation4] sm:$0xff]
    %v50 = vld [vmem:[#allocation4 + $0x8] sm:$0xff]
    %v51 = vld [vmem:[#allocation4 + $0x10] sm:$0xff]
    %v52 = vld [vmem:[#allocation4 + $0x18] sm:$0xff]
    %v53 = vld [vmem:[#allocation4 + $0x20] sm:$0xff]
    %v54 = vld [vmem:[#allocation4 + $0x28] sm:$0xff]
    %v55 = vld [vmem:[#allocation4 + $0x30] sm:$0xff]
    %v56 = vld [vmem:[#allocation4 + $0x38] sm:$0xff]
    %v57 = vld [vmem:[#allocation4 + $0x40] sm:$0xff]
    %v58 = vld [vmem:[#allocation4 + $0x48] sm:$0xff]
    %v59 = vld [vmem:[#allocation4 + $0x50] sm:$0xff]
    %v60 = vld [vmem:[#allocation4 + $0x58] sm:$0xff]
    %v61 = vld [vmem:[#allocation4 + $0x60] sm:$0xff]
    %v62 = vld [vmem:[#allocation4 + $0x68] sm:$0xff]
    %v63 = vld [vmem:[#allocation4 + $0x70] sm:$0xff]
    %v64 = vld [vmem:[#allocation4 + $0x78] sm:$0xff]
    %v65 = vld [vmem:[%s2] sm:$0x1]
    %v67 = vlaneseq
    %v68 = vshrl.u32 %v67, 7
    %v69 = vsub.s32 0, %v68
    %v70 = vrot.slane %v65, %v69
    %72 = vmatprep.subr.mxu0 0.0
    %73 = vmatpush1.msra.mxu0 %v64
    %74 = vmatprep.subr.mxu0 0.0
    %75 = vmatpush1.msra.mxu0 %v63
    %76 = vmatprep.subr.mxu0 0.0
    %77 = vmatpush1.msra.mxu0 %v62
    %78 = vmatprep.subr.mxu0 0.0
    %79 = vmatpush1.msra.mxu0 %v61
    %80 = vmatprep.subr.mxu0 0.0
    %81 = vmatpush1.msra.mxu0 %v60
    %82 = vmatprep.subr.mxu0 0.0
    %83 = vmatpush1.msra.mxu0 %v59
    %84 = vmatprep.subr.mxu0 0.0
    %85 = vmatpush1.msra.mxu0 %v58
    %86 = vmatprep.subr.mxu0 0.0
    %87 = vmatpush1.msra.mxu0 %v57
    %88 = vmatprep.subr.mxu0 0.0
    %89 = vmatpush1.msra.mxu0 %v56
    %90 = vmatprep.subr.mxu0 0.0
    %91 = vmatpush1.msra.mxu0 %v55
    %92 = vmatprep.subr.mxu0 0.0
    %93 = vmatpush1.msra.mxu0 %v54
    %94 = vmatprep.subr.mxu0 0.0
    %95 = vmatpush1.msra.mxu0 %v53
    %96 = vmatprep.subr.mxu0 0.0
    %97 = vmatpush1.msra.mxu0 %v52
    %98 = vmatprep.subr.mxu0 0.0
    %99 = vmatpush1.msra.mxu0 %v51
    %100 = vmatprep.subr.mxu0 0.0
    %101 = vmatpush1.msra.mxu0 %v50
    %102 = vmatprep.subr.mxu0 0.0
    %103 = vmatpush1.msra.mxu0 %v49
    %104 = vmatprep.subr.mxu0 0.0
    %105 = vmatpush2.msra.mxu0 0.0
    %106 = vmatprep.subr.mxu0 0.0
    %107 = vmatpush2.msra.mxu0 0.0
    %108 = vmatprep.subr.mxu0 0.0
    %109 = vmatpush2.msra.mxu0 0.0
    %110 = vmatprep.subr.mxu0 0.0
    %111 = vmatpush2.msra.mxu0 0.0
    %112 = vmatprep.subr.mxu0 0.0
    %113 = vmatpush2.msra.mxu0 0.0
    %114 = vmatprep.subr.mxu0 0.0
    %115 = vmatpush2.msra.mxu0 0.0
    %116 = vmatprep.subr.mxu0 0.0
    %117 = vmatpush2.msra.mxu0 0.0
    %118 = vmatprep.subr.mxu0 0.0
    %119 = vmatpush2.msra.mxu0 0.0
    %120 = vmatprep.subr.mxu0 0.0
    %121 = vmatpush2.msra.mxu0 0.0
    %122 = vmatprep.subr.mxu0 0.0
    %123 = vmatpush2.msra.mxu0 0.0
    %124 = vmatprep.subr.mxu0 0.0
    %125 = vmatpush2.msra.mxu0 0.0
    %126 = vmatprep.subr.mxu0 0.0
    %127 = vmatpush2.msra.mxu0 0.0
    %128 = vmatprep.subr.mxu0 0.0
    %129 = vmatpush2.msra.mxu0 0.0
    %130 = vmatprep.subr.mxu0 0.0
    %131 = vmatpush2.msra.mxu0 0.0
    %132 = vmatprep.subr.mxu0 0.0
    %133 = vmatpush2.msra.mxu0 0.0
    %134 = vmatprep.subr.mxu0 0.0
    %135 = vmatpush2.msra.mxu0 0.0
    %136 = vmatprep.mubr.f32.mxu0 0.0
    %137 = vmatmul.mubr.f32.gmra.mxu0 %v47
    %v138 = vpop.f32.mrf.mxu0
    %v139 = vadd.f32 %v70, %v138
    %v140 = vpop.f32.mrf.mxu0
    %141 = vmatprep.mubr.f32.mxu0 0.0
    %142 = vmatmul.mubr.f32.gmra.mxu0 %v48
    %v143 = vpop.f32.mrf.mxu0
    %v144 = vadd.f32 %v70, %v143
    %v145 = vpop.f32.mrf.mxu0
    %146 = vdwg.mxu0
    %vm147 = vcmp.ge.f32.partialorder %v139, 0.0
    %vm148 = vcmp.ge.f32.partialorder %v144, 0.0
    %v149 = vsub.f32 0.0, %v139
    %v150 = vsub.f32 0.0, %v144
    %v151 = vmul.f32 %v149, 1.442695
    %v152 = vpow.pop %v151
    %v153 = vmul.f32 %v150, 1.442695
    %v154 = vpow.pop %v153
    %v155 = vadd.f32 %v152, 1.0
    %v156 = vlog2.pop %v155
    %v157 = vmul.f32 %v156, 0.6931472
    %v158 = vmul.f32 -0.5, %v152
    %v159 = vadd.f32 %v158, 1.0
    %v160 = vmul.f32 %v159, %v152
    %v161 = vand.u32 2147483647, %v152
    %vm162 = vcmp.lt.f32.partialorder %v161, 0.0004427343
    %v163 = vsel %vm162, %v160, %v157
    %v164 = vadd.f32 %v154, 1.0
    %v165 = vlog2.pop %v164
    %v166 = vmul.f32 %v165, 0.6931472
    %v167 = vmul.f32 -0.5, %v154
    %v168 = vadd.f32 %v167, 1.0
    %v169 = vmul.f32 %v168, %v154
    %v170 = vand.u32 2147483647, %v154
    %vm171 = vcmp.lt.f32.partialorder %v170, 0.0004427343
    %v172 = vsel %vm171, %v169, %v166
    %v173 = vsub.f32 0.0, %v163
    %v174 = vsub.f32 0.0, %v172
    %v175 = vmul.f32 %v139, 1.442695
    %v176 = vpow.pop %v175
    %v177 = vmul.f32 %v144, 1.442695
    %v178 = vpow.pop %v177
    %v179 = vadd.f32 %v176, 1.0
    %v180 = vlog2.pop %v179
    %v181 = vmul.f32 %v180, 0.6931472
    %v182 = vmul.f32 -0.5, %v176
    %v183 = vadd.f32 %v182, 1.0
    %v184 = vmul.f32 %v183, %v176
    %v185 = vand.u32 2147483647, %v176
    %vm186 = vcmp.lt.f32.partialorder %v185, 0.0004427343
    %v187 = vsel %vm186, %v184, %v181
    %v188 = vadd.f32 %v178, 1.0
    %v189 = vlog2.pop %v188
    %v190 = vmul.f32 %v189, 0.6931472
    %v191 = vmul.f32 -0.5, %v178
    %v192 = vadd.f32 %v191, 1.0
    %v193 = vmul.f32 %v192, %v178
    %v194 = vand.u32 2147483647, %v178
    %vm195 = vcmp.lt.f32.partialorder %v194, 0.0004427343
    %v196 = vsel %vm195, %v193, %v190
    %v197 = vsub.f32 %v139, %v187
    %v198 = vsub.f32 %v144, %v196
    %v199 = vsel %vm147, %v173, %v197
    %v200 = vsel %vm148, %v174, %v198
    %vm201 = vcmask 7168
    %202 = vst.msk [vmem:[%s3] sm:$0xff] %vm201, %v199
    %203 = vst.msk [vmem:[%s3 + $0x8] sm:$0xff] %vm201, %v200
    %206 = vrot.lane.b32.xlu0 %v199, 127
    %v207 = vpop.permute.xlu0 %206
    %208 = vrot.lane.b32.xlu0 %v200, 127
    %v209 = vpop.permute.xlu0 %208
    %212 = vst.msk [vmem:[%s4] sm:$0xff] %vm201, %v207
    %213 = vst.msk [vmem:[%s4 + $0x8] sm:$0xff] %vm201, %v209
    %vm214 = vcmask 64528
    %v215 = vsel %vm214, %v139, -inf
    %216 = vmax.xlane.f32.xlu0 %v215
    %v217 = vpop.xlane.xlu0 %216
    %v218 = vsel %vm214, %v144, -inf
    %219 = vmax.xlane.f32.xlu0 %v218
    %v220 = vpop.xlane.xlu0 %219
    %v221 = vsub.f32 %v139, %v217
    %v222 = vsub.f32 %v144, %v220
    %v223 = vmul.f32 %v221, 1.442695
    %v224 = vpow.pop %v223
    %v225 = vmul.f32 %v222, 1.442695
    %v226 = vpow.pop %v225
    %229 = vrot.lane.b32.xlu0 %v224, 126
    %v230 = vpop.permute.xlu0 %229
    %231 = vrot.lane.b32.xlu0 %v226, 126
    %v232 = vpop.permute.xlu0 %231
    %vm235 = vcmask 48128
    %v236 = vsel %vm235, %v230, 0.0
    %237 = vadd.xlane.f32.xlu0 %v236
    %v238 = vpop.xlane.xlu0 %237
    %v239 = vsel %vm235, %v232, 0.0
    %240 = vadd.xlane.f32.xlu0 %v239
    %v241 = vpop.xlane.xlu0 %240
    %v242 = vlog2.pop %v238
    %v243 = vmul.f32 %v242, 0.6931472
    %v244 = vlog2.pop %v241
    %v245 = vmul.f32 %v244, 0.6931472
    %v246 = vsub.f32 %v221, %v243
    %v247 = vsub.f32 %v222, %v245
    %250 = vrot.lane.b32.xlu0 %v246, 126
    %v251 = vpop.permute.xlu0 %250
    %252 = vrot.lane.b32.xlu0 %v247, 126
    %v253 = vpop.permute.xlu0 %252
    %256 = vst.msk [vmem:[%s5] sm:$0xff] %vm235, %v251
    %257 = vst.msk [vmem:[%s5 + $0x8] sm:$0xff] %vm235, %v253
    %vm258 = vcmask 97344
    %v259 = vsel %vm258, %v139, -inf
    %260 = vmax.xlane.f32.xlu0 %v259
    %v261 = vpop.xlane.xlu0 %260
    %v262 = vsel %vm258, %v144, -inf
    %263 = vmax.xlane.f32.xlu0 %v262
    %v264 = vpop.xlane.xlu0 %263
    %v265 = vsub.f32 %v139, %v261
    %v266 = vsub.f32 %v144, %v264
    %v267 = vmul.f32 %v265, 1.442695
    %v268 = vpow.pop %v267
    %v269 = vmul.f32 %v266, 1.442695
    %v270 = vpow.pop %v269
    %273 = vrot.lane.b32.xlu0 %v268, 120
    %v274 = vpop.permute.xlu0 %273
    %275 = vrot.lane.b32.xlu0 %v270, 120
    %v276 = vpop.permute.xlu0 %275
    %vm279 = vcmask 31744
    %v280 = vsel %vm279, %v274, 0.0
    %281 = vadd.xlane.f32.xlu0 %v280
    %v282 = vpop.xlane.xlu0 %281
    %v283 = vsel %vm279, %v276, 0.0
    %284 = vadd.xlane.f32.xlu0 %v283
    %v285 = vpop.xlane.xlu0 %284
    %v286 = vlog2.pop %v282
    %v287 = vmul.f32 %v286, 0.6931472
    %v288 = vlog2.pop %v285
    %v289 = vmul.f32 %v288, 0.6931472
    %v290 = vsub.f32 %v265, %v287
    %v291 = vsub.f32 %v266, %v289
    %294 = vrot.lane.b32.xlu0 %v290, 120
    %v295 = vpop.permute.xlu0 %294
    %296 = vrot.lane.b32.xlu0 %v291, 120
    %v297 = vpop.permute.xlu0 %296
    %300 = vst.msk [vmem:[%s6] sm:$0xff] %vm279, %v295
    %301 = vst.msk [vmem:[%s6 + $0x8] sm:$0xff] %vm279, %v297
    %vm302 = vcmask 138336
    %v303 = vsel %vm302, %v139, -inf
    %304 = vmax.xlane.f32.xlu0 %v303
    %v305 = vpop.xlane.xlu0 %304
    %v306 = vsel %vm302, %v144, -inf
    %307 = vmax.xlane.f32.xlu0 %v306
    %v308 = vpop.xlane.xlu0 %307
    %v309 = vsub.f32 %v139, %v305
    %v310 = vsub.f32 %v144, %v308
    %v311 = vmul.f32 %v309, 1.442695
    %v312 = vpow.pop %v311
    %v313 = vmul.f32 %v310, 1.442695
    %v314 = vpow.pop %v313
    %317 = vrot.lane.b32.xlu0 %v312, 116
    %v318 = vpop.permute.xlu0 %317
    %319 = vrot.lane.b32.xlu0 %v314, 116
    %v320 = vpop.permute.xlu0 %319
    %vm323 = vcmask 39936
    %v324 = vsel %vm323, %v318, 0.0
    %325 = vadd.xlane.f32.xlu0 %v324
    %v326 = vpop.xlane.xlu0 %325
    %v327 = vsel %vm323, %v320, 0.0
    %328 = vadd.xlane.f32.xlu0 %v327
    %v329 = vpop.xlane.xlu0 %328
    %v330 = vlog2.pop %v326
    %v331 = vmul.f32 %v330, 0.6931472
    %v332 = vlog2.pop %v329
    %v333 = vmul.f32 %v332, 0.6931472
    %v334 = vsub.f32 %v309, %v331
    %v335 = vsub.f32 %v310, %v333
    %338 = vrot.lane.b32.xlu0 %v334, 116
    %v339 = vpop.permute.xlu0 %338
    %340 = vrot.lane.b32.xlu0 %v335, 116
    %v341 = vpop.permute.xlu0 %340
    %344 = vst.msk [vmem:[%s7] sm:$0xff] %vm323, %v339
    %345 = vst.msk [vmem:[%s7 + $0x8] sm:$0xff] %vm323, %v341
    // Predicated region
    $region22: #{tpu_custom_call.1} parent=1 // pred_check
      _
    $region23: #{tpu_custom_call.1} parent=1 // pred_check_branch
      %347 = sbr.rel (0) target = $region25
    $region24: #{tpu_custom_call.1} parent=1 // pred_region
      _
    $region25: #{tpu_custom_call.1} parent=1 // pred_fallthru
      _
    // Predicated region
    $region26: #{tpu_custom_call.1} parent=1 // pred_check
      _
    $region27: #{tpu_custom_call.1} parent=1 // pred_check_branch
      %349 = sbr.rel (0) target = $region29
    $region28: #{tpu_custom_call.1} parent=1 // pred_region
      _
    $region29: #{tpu_custom_call.1} parent=1 // pred_fallthru
      _
    // Predicated region
    $region30: #{tpu_custom_call.1} parent=1 // pred_check
      _
    $region31: #{tpu_custom_call.1} parent=1 // pred_check_branch
      %351 = sbr.rel (0) target = $region33
    $region32: #{tpu_custom_call.1} parent=1 // pred_region
      _
    $region33: #{tpu_custom_call.1} parent=1 // pred_fallthru
      _
    // Predicated region
    $region34: #{tpu_custom_call.1} parent=1 // pred_check
      _
    $region35: #{tpu_custom_call.1} parent=1 // pred_check_branch
      %353 = sbr.rel (0) target = $region37
    $region36: #{tpu_custom_call.1} parent=1 // pred_region
      _
    $region37: #{tpu_custom_call.1} parent=1 // pred_fallthru
      _
    // Predicated region
    $region38: #{tpu_custom_call.1} parent=1 // pred_check
      _
    $region39: #{tpu_custom_call.1} parent=1 // pred_check_branch
      %355 = sbr.rel (0) target = $region41
    $region40: #{tpu_custom_call.1} parent=1 // pred_region
      _
    $region41: #{tpu_custom_call.1} parent=1 // pred_fallthru
      _
    // Predicated region
    $region42: #{tpu_custom_call.1} parent=1 // pred_check
      _
    $region43: #{tpu_custom_call.1} parent=1 // pred_check_branch
      %357 = sbr.rel (0) target = $region45
    $region44: #{tpu_custom_call.1} parent=1 // pred_region
      _
    $region45: #{tpu_custom_call.1} parent=1 // pred_fallthru
      _
    // Predicated region
    $region46: #{tpu_custom_call.1} parent=1 // pred_check
      _
    $region47: #{tpu_custom_call.1} parent=1 // pred_check_branch
      %359 = sbr.rel (0) target = $region49
    $region48: #{tpu_custom_call.1} parent=1 // pred_region
      _
    $region49: #{tpu_custom_call.1} parent=1 // pred_fallthru
      _
    // Predicated region
    $region50: #{tpu_custom_call.1} parent=1 // pred_check
      _
    $region51: #{tpu_custom_call.1} parent=1 // pred_check_branch
      %361 = sbr.rel (0) target = $region53
    $region52: #{tpu_custom_call.1} parent=1 // pred_region
      _
    $region53: #{tpu_custom_call.1} parent=1 // pred_fallthru
      _
    // Predicated region
    $region54: #{tpu_custom_call.1} parent=1 // pred_check
      _
    $region55: #{tpu_custom_call.1} parent=1 // pred_check_branch
      %363 = sbr.rel (0) target = $region57
    $region56: #{tpu_custom_call.1} parent=1 // pred_region
      _
    $region57: #{tpu_custom_call.1} parent=1 // pred_fallthru
      _
    // Predicated region
    $region58: #{tpu_custom_call.1} parent=1 // pred_check
      _
    $region59: #{tpu_custom_call.1} parent=1 // pred_check_branch
      %365 = sbr.rel (0) target = $region61
    $region60: #{tpu_custom_call.1} parent=1 // pred_region
      _
    $region61: #{tpu_custom_call.1} parent=1 // pred_fallthru
      _
    %366 = vsyncpa [#allocation3], 1
    %367 = vsyncpa [#allocation5], 1

</llo_original>
